<compile_context>
chip_gen: v6e
topology: v6e:2x2x1
jax: 0.10.0
libtpu: 0.0.40
codegen_flags: <defaults>
</compile_context>

<pallas_src>
import jax
import jax.numpy as jnp
from jax.experimental import pallas as pl
from jax.experimental.pallas import tpu as pltpu


def net_kernel(x_ref, wfc1_ref, wfc2_ref, bfc2_ref, w1_ref, bfc1_ref, o_ref):
    # x_ref:   [C, TB, HW]  (VMEM)   input, channel-major / batch-second
    # wfc1/wfc2/bfc2: [2, HW] (VMEM) fc weights/bias in channel-major rows
    # w1_ref:  [2*C] (SMEM)  conv weight, index o*C + c
    # bfc1_ref:[1]   (SMEM)  fc1 bias
    # o_ref:   [TB, 2*HW] (VMEM) lane-dense output slab
    C = x_ref.shape[0]
    HW = o_ref.shape[1] // 2
    inv_hw = 1.0 / float(HW)

    # --- 1x1 conv as unrolled VPU FMAs over the small static channel dim.
    # Scalar (SMEM) weight * [TB, HW] vreg slab; keeps the MXU out of the
    # critical path for this degenerate (2 x C) matmul. Conv bias is dropped:
    # InstanceNorm's mean subtraction removes it exactly.
    x0 = x_ref[0]                                   # [TB, HW]
    y0 = w1_ref[0] * x0
    y1 = w1_ref[C] * x0
    for c in range(1, C):
        xc = x_ref[c]
        y0 = y0 + w1_ref[c] * xc
        y1 = y1 + w1_ref[C + c] * xc

    # --- InstanceNorm2d(2): per-(batch, channel) stats over HW, biased
    # variance, eps=1e-5, no affine (PyTorch defaults). Fused single pass.
    def inst_norm(y):
        s1 = jnp.sum(y, axis=-1, keepdims=True)             # [TB, 1]
        s2 = jnp.sum(y * y, axis=-1, keepdims=True)         # [TB, 1]
        mean = s1 * inv_hw
        var = jnp.maximum(s2 * inv_hw - mean * mean, 0.0)
        return (y - mean) * jax.lax.rsqrt(var + 1e-5)

    n0 = inst_norm(y0)
    n1 = inst_norm(y1)

    # --- LeakyReLU, default negative_slope = 0.01
    a0 = jnp.where(n0 >= 0, n0, 0.01 * n0)
    a1 = jnp.where(n1 >= 0, n1, 0.01 * n1)

    # --- fcn1: Linear(2*HW, 1) == per-row full reduction of act * weight.
    z = (jnp.sum(a0 * wfc1_ref[0:1, :], axis=-1, keepdims=True)
         + jnp.sum(a1 * wfc1_ref[1:2, :], axis=-1, keepdims=True)
         + bfc1_ref[0])                                      # [TB, 1]

    # --- fcn2: Linear(1, 2*HW) == rank-1 outer product + bias.
    # Channel 0 occupies lanes [0, HW), channel 1 lanes [HW, 2*HW): both
    # stores are 128-aligned and unmasked in the lane dim.
    o_ref[:, :HW] = z * wfc2_ref[0:1, :] + bfc2_ref[0:1, :]
    o_ref[:, HW:] = z * wfc2_ref[1:2, :] + bfc2_ref[1:2, :]


def _round_up(v, m):
    return -(-v // m) * m


def net_forward(x, params, batch_tile=None):
    """x: [B, S, H, W, 2] float32. Returns [B, H, W, 2] float32."""
    w_conv, b_conv, w_fc1, b_fc1, w_fc2, b_fc2 = params
    del b_conv  # no-op through InstanceNorm (mean-subtracted in the kernel)
    B, S, H, W, two = x.shape
    assert two == 2
    C = 2 * S
    HW = H * W

    # Channel-major / batch-second layout [C, B, HW] with channel c = 2*s + p,
    # matching the PyTorch permute(0,1,4,2,3).reshape(B, 2S, H, W).
    x_cbn = jnp.transpose(x, (1, 4, 0, 2, 3)).reshape(C, B, HW)

    # Batch-tile size: auto-pick the smallest 8-aligned tile that covers the
    # whole batch in one grid step, capped by a modest VMEM budget (input +
    # output slabs, double-buffered). Fewer grid steps = less per-step
    # pipeline overhead and denser sublane usage.
    if batch_tile is None:
        bytes_per_row = (C + 2) * HW * 4          # input row + output row
        cap = max(8, min(64, ((8 << 20) // (2 * bytes_per_row)) // 8 * 8))
        TB = min(cap, _round_up(B, 8))
    else:
        TB = int(batch_tile)
    n_steps = -(-B // TB)
    if n_steps > 1 and TB % 8 != 0:
        raise ValueError("batch_tile must be a multiple of 8 when it tiles the batch")
    B_pad = n_steps * TB
    if B_pad != B:
        # Garbage rows stay finite (InstanceNorm of a constant is 0) and are
        # sliced off at the end.
        x_cbn = jnp.pad(x_cbn, ((0, 0), (0, B_pad - B), (0, 0)))

    # Parameter slabs in kernel layout.
    w1 = w_conv.reshape(2 * C).astype(jnp.float32)    # conv (2, C, 1, 1) -> [o*C + c]
    bfc1 = b_fc1.reshape(1).astype(jnp.float32)
    wfc1 = w_fc1.reshape(2, HW).astype(jnp.float32)   # Linear(2*HW, 1) weight (1, 2*HW)
    wfc2 = w_fc2.reshape(2, HW).astype(jnp.float32)   # Linear(1, 2*HW) weight (2*HW, 1)
    bfc2 = b_fc2.reshape(2, HW).astype(jnp.float32)

    out = pl.pallas_call(
        net_kernel,
        out_shape=jax.ShapeDtypeStruct((B_pad, 2 * HW), jnp.float32),
        grid_spec=pltpu.PrefetchScalarGridSpec(
            num_scalar_prefetch=0,
            grid=(n_steps,),
            in_specs=[
                pl.BlockSpec((C, TB, HW), lambda b: (0, b, 0)),
                pl.BlockSpec((2, HW), lambda b: (0, 0)),
                pl.BlockSpec((2, HW), lambda b: (0, 0)),
                pl.BlockSpec((2, HW), lambda b: (0, 0)),
                pl.BlockSpec(memory_space=pltpu.MemorySpace.SMEM),
                pl.BlockSpec(memory_space=pltpu.MemorySpace.SMEM),
            ],
            out_specs=pl.BlockSpec((TB, 2 * HW), lambda b: (b, 0)),
        ),
        compiler_params=pltpu.CompilerParams(
            dimension_semantics=("parallel",)),
    )(x_cbn, wfc1, wfc2, bfc2, w1, bfc1)

    # view(-1, 2, H, W).permute(0, 2, 3, 1) — tiny, left to XLA.
    return out[:B].reshape(B, 2, H, W).transpose(0, 2, 3, 1)


def net_reference(x, params):
    """Pure-JAX reference of the PyTorch forward for validation."""
    w_conv, b_conv, w_fc1, b_fc1, w_fc2, b_fc2 = params
    B, S, H, W, _ = x.shape
    C = 2 * S
    xc = jnp.transpose(x, (0, 1, 4, 2, 3)).reshape(B, C, H * W)
    y = jnp.einsum("oc,bcn->bon", w_conv.reshape(2, C), xc) + b_conv[None, :, None]
    mean = jnp.mean(y, axis=-1, keepdims=True)
    var = jnp.mean((y - mean) ** 2, axis=-1, keepdims=True)
    yn = (y - mean) / jnp.sqrt(var + 1e-5)
    act = jnp.where(yn >= 0, yn, 0.01 * yn)
    flat = act.reshape(B, 2 * H * W)
    z = flat @ w_fc1.T + b_fc1
    o = z @ w_fc2.T + b_fc2
    return o.reshape(B, 2, H, W).transpose(0, 2, 3, 1)


def init_params(key, u_steps, im_side):
    """Deterministic PyTorch-style uniform(-1/sqrt(fan_in), 1/sqrt(fan_in)) init."""
    k = jax.random.split(key, 6)
    n = im_side * im_side * 2
    bc = 1.0 / jnp.sqrt(float(u_steps))          # conv fan_in = u_steps * 1 * 1
    b1 = 1.0 / jnp.sqrt(float(n))                # fc1 fan_in
    b2 = 1.0                                     # fc2 fan_in = 1
    w_conv = jax.random.uniform(k[0], (2, u_steps, 1, 1), jnp.float32, -bc, bc)
    b_conv = jax.random.uniform(k[1], (2,), jnp.float32, -bc, bc)
    w_fc1 = jax.random.uniform(k[2], (1, n), jnp.float32, -b1, b1)
    b_fc1 = jax.random.uniform(k[3], (1,), jnp.float32, -b1, b1)
    w_fc2 = jax.random.uniform(k[4], (n, 1), jnp.float32, -b2, b2)
    b_fc2 = jax.random.uniform(k[5], (n,), jnp.float32, -b2, b2)
    return (w_conv, b_conv, w_fc1, b_fc1, w_fc2, b_fc2)


if __name__ == "__main__":
    # Net(u_steps=4, im_side=16); forward input is [B, u_steps//2, H, W, 2]
    # so that 2*shape[1] == conv in_channels (as the PyTorch reshape requires).
    # B=12 exercises the padded tail (auto TB=16, single grid step) and the
    # second run with batch_tile=8 exercises a multi-step grid.
    u_steps, im_side, B = 4, 16, 12
    key = jax.random.PRNGKey(0)
    kx, kp = jax.random.split(key)
    x = jax.random.normal(kx, (B, u_steps // 2, im_side, im_side, 2), jnp.float32)
    params = init_params(kp, u_steps, im_side)

    ref = jax.block_until_ready(net_reference(x, params))

    out = jax.block_until_ready(net_forward(x, params))          # auto TB (1 step)
    assert out.shape == (B, im_side, im_side, 2), out.shape
    err = float(jnp.max(jnp.abs(out - ref)))
    assert jnp.allclose(out, ref, atol=1e-4, rtol=1e-4), err

    out2 = jax.block_until_ready(net_forward(x, params, batch_tile=8))  # 2 steps
    err2 = float(jnp.max(jnp.abs(out2 - ref)))
    assert jnp.allclose(out2, ref, atol=1e-4, rtol=1e-4), err2

    print("KERNEL_OK")
</pallas_src>

<mosaic_0001>
module attributes {stable_mosaic.version = 11 : i64} {
  func.func @net_kernel(%arg0: i32, %arg1: memref<4x16x256xf32, #tpu.memory_space<vmem>>, %arg2: memref<2x256xf32, #tpu.memory_space<vmem>>, %arg3: memref<2x256xf32, #tpu.memory_space<vmem>>, %arg4: memref<2x256xf32, #tpu.memory_space<vmem>>, %arg5: memref<8xf32, #tpu.memory_space<smem>>, %arg6: memref<1xf32, #tpu.memory_space<smem>>, %arg7: memref<16x512xf32, #tpu.memory_space<vmem>>) attributes {dimension_semantics = [#tpu.dimension_semantics<parallel>], iteration_bounds = array<i64: 1>, scalar_prefetch = 0 : i64, scratch_operands = 0 : i64, tpu.core_type = #tpu.core_type<tc>, window_params = [{transform_indices = @transform_0, window_bounds = array<i64: 4, 16, 256>}, {pipeline_mode = #tpu.pipeline_mode<synchronous>, transform_indices = @transform_1, window_bounds = array<i64: 2, 256>}, {pipeline_mode = #tpu.pipeline_mode<synchronous>, transform_indices = @transform_2, window_bounds = array<i64: 2, 256>}, {pipeline_mode = #tpu.pipeline_mode<synchronous>, transform_indices = @transform_3, window_bounds = array<i64: 2, 256>}, {transform_indices = @transform_4, window_bounds = array<i64: 8>}, {transform_indices = @transform_5, window_bounds = array<i64: 1>}, {transform_indices = @transform_6, window_bounds = array<i64: 16, 512>}]} {
    %c0 = arith.constant 0 : index
    %c0_0 = arith.constant 0 : index
    %c0_1 = arith.constant 0 : index
    %0 = vector.load %arg1[%c0, %c0_0, %c0_1] : memref<4x16x256xf32, #tpu.memory_space<vmem>>, vector<1x16x256xf32>
    %1 = vector.shape_cast %0 : vector<1x16x256xf32> to vector<16x256xf32>
    %c0_2 = arith.constant 0 : index
    %2 = memref.load %arg5[%c0_2] : memref<8xf32, #tpu.memory_space<smem>>
    %3 = vector.broadcast %2 : f32 to vector<16x256xf32>
    %4 = arith.mulf %3, %1 : vector<16x256xf32>
    %c4 = arith.constant 4 : index
    %5 = memref.load %arg5[%c4] : memref<8xf32, #tpu.memory_space<smem>>
    %6 = vector.broadcast %5 : f32 to vector<16x256xf32>
    %7 = arith.mulf %6, %1 : vector<16x256xf32>
    %c1 = arith.constant 1 : index
    %c0_3 = arith.constant 0 : index
    %c0_4 = arith.constant 0 : index
    %8 = vector.load %arg1[%c1, %c0_3, %c0_4] : memref<4x16x256xf32, #tpu.memory_space<vmem>>, vector<1x16x256xf32>
    %9 = vector.shape_cast %8 : vector<1x16x256xf32> to vector<16x256xf32>
    %c1_5 = arith.constant 1 : index
    %10 = memref.load %arg5[%c1_5] : memref<8xf32, #tpu.memory_space<smem>>
    %11 = vector.broadcast %10 : f32 to vector<16x256xf32>
    %12 = arith.mulf %11, %9 : vector<16x256xf32>
    %13 = arith.addf %4, %12 : vector<16x256xf32>
    %c5 = arith.constant 5 : index
    %14 = memref.load %arg5[%c5] : memref<8xf32, #tpu.memory_space<smem>>
    %15 = vector.broadcast %14 : f32 to vector<16x256xf32>
    %16 = arith.mulf %15, %9 : vector<16x256xf32>
    %17 = arith.addf %7, %16 : vector<16x256xf32>
    %c2 = arith.constant 2 : index
    %c0_6 = arith.constant 0 : index
    %c0_7 = arith.constant 0 : index
    %18 = vector.load %arg1[%c2, %c0_6, %c0_7] : memref<4x16x256xf32, #tpu.memory_space<vmem>>, vector<1x16x256xf32>
    %19 = vector.shape_cast %18 : vector<1x16x256xf32> to vector<16x256xf32>
    %c2_8 = arith.constant 2 : index
    %20 = memref.load %arg5[%c2_8] : memref<8xf32, #tpu.memory_space<smem>>
    %21 = vector.broadcast %20 : f32 to vector<16x256xf32>
    %22 = arith.mulf %21, %19 : vector<16x256xf32>
    %23 = arith.addf %13, %22 : vector<16x256xf32>
    %c6 = arith.constant 6 : index
    %24 = memref.load %arg5[%c6] : memref<8xf32, #tpu.memory_space<smem>>
    %25 = vector.broadcast %24 : f32 to vector<16x256xf32>
    %26 = arith.mulf %25, %19 : vector<16x256xf32>
    %27 = arith.addf %17, %26 : vector<16x256xf32>
    %c3 = arith.constant 3 : index
    %c0_9 = arith.constant 0 : index
    %c0_10 = arith.constant 0 : index
    %28 = vector.load %arg1[%c3, %c0_9, %c0_10] : memref<4x16x256xf32, #tpu.memory_space<vmem>>, vector<1x16x256xf32>
    %29 = vector.shape_cast %28 : vector<1x16x256xf32> to vector<16x256xf32>
    %c3_11 = arith.constant 3 : index
    %30 = memref.load %arg5[%c3_11] : memref<8xf32, #tpu.memory_space<smem>>
    %31 = vector.broadcast %30 : f32 to vector<16x256xf32>
    %32 = arith.mulf %31, %29 : vector<16x256xf32>
    %33 = arith.addf %23, %32 : vector<16x256xf32>
    %c7 = arith.constant 7 : index
    %34 = memref.load %arg5[%c7] : memref<8xf32, #tpu.memory_space<smem>>
    %35 = vector.broadcast %34 : f32 to vector<16x256xf32>
    %36 = arith.mulf %35, %29 : vector<16x256xf32>
    %37 = arith.addf %27, %36 : vector<16x256xf32>
    %cst = arith.constant dense<0.000000e+00> : vector<16xf32>
    %38 = vector.multi_reduction <add>, %33, %cst [1] : vector<16x256xf32> to vector<16xf32>
    %39 = vector.shape_cast %38 : vector<16xf32> to vector<16x1xf32>
    %40 = arith.mulf %33, %33 : vector<16x256xf32>
    %cst_12 = arith.constant dense<0.000000e+00> : vector<16xf32>
    %41 = vector.multi_reduction <add>, %40, %cst_12 [1] : vector<16x256xf32> to vector<16xf32>
    %42 = vector.shape_cast %41 : vector<16xf32> to vector<16x1xf32>
    %cst_13 = arith.constant 3.906250e-03 : f32
    %43 = vector.broadcast %cst_13 : f32 to vector<16x1xf32>
    %44 = arith.mulf %39, %43 : vector<16x1xf32>
    %cst_14 = arith.constant 3.906250e-03 : f32
    %45 = vector.broadcast %cst_14 : f32 to vector<16x1xf32>
    %46 = arith.mulf %42, %45 : vector<16x1xf32>
    %47 = arith.mulf %44, %44 : vector<16x1xf32>
    %48 = arith.subf %46, %47 : vector<16x1xf32>
    %cst_15 = arith.constant 0.000000e+00 : f32
    %49 = vector.broadcast %cst_15 : f32 to vector<16x1xf32>
    %50 = arith.maximumf %48, %49 : vector<16x1xf32>
    %51 = vector.broadcast %44 : vector<16x1xf32> to vector<16x256xf32>
    %52 = arith.subf %33, %51 : vector<16x256xf32>
    %cst_16 = arith.constant 9.99999974E-6 : f32
    %53 = vector.broadcast %cst_16 : f32 to vector<16x1xf32>
    %54 = arith.addf %50, %53 : vector<16x1xf32>
    %55 = math.rsqrt %54 : vector<16x1xf32>
    %56 = vector.broadcast %55 : vector<16x1xf32> to vector<16x256xf32>
    %57 = arith.mulf %52, %56 : vector<16x256xf32>
    %cst_17 = arith.constant dense<0.000000e+00> : vector<16xf32>
    %58 = vector.multi_reduction <add>, %37, %cst_17 [1] : vector<16x256xf32> to vector<16xf32>
    %59 = vector.shape_cast %58 : vector<16xf32> to vector<16x1xf32>
    %60 = arith.mulf %37, %37 : vector<16x256xf32>
    %cst_18 = arith.constant dense<0.000000e+00> : vector<16xf32>
    %61 = vector.multi_reduction <add>, %60, %cst_18 [1] : vector<16x256xf32> to vector<16xf32>
    %62 = vector.shape_cast %61 : vector<16xf32> to vector<16x1xf32>
    %cst_19 = arith.constant 3.906250e-03 : f32
    %63 = vector.broadcast %cst_19 : f32 to vector<16x1xf32>
    %64 = arith.mulf %59, %63 : vector<16x1xf32>
    %cst_20 = arith.constant 3.906250e-03 : f32
    %65 = vector.broadcast %cst_20 : f32 to vector<16x1xf32>
    %66 = arith.mulf %62, %65 : vector<16x1xf32>
    %67 = arith.mulf %64, %64 : vector<16x1xf32>
    %68 = arith.subf %66, %67 : vector<16x1xf32>
    %cst_21 = arith.constant 0.000000e+00 : f32
    %69 = vector.broadcast %cst_21 : f32 to vector<16x1xf32>
    %70 = arith.maximumf %68, %69 : vector<16x1xf32>
    %71 = vector.broadcast %64 : vector<16x1xf32> to vector<16x256xf32>
    %72 = arith.subf %37, %71 : vector<16x256xf32>
    %cst_22 = arith.constant 9.99999974E-6 : f32
    %73 = vector.broadcast %cst_22 : f32 to vector<16x1xf32>
    %74 = arith.addf %70, %73 : vector<16x1xf32>
    %75 = math.rsqrt %74 : vector<16x1xf32>
    %76 = vector.broadcast %75 : vector<16x1xf32> to vector<16x256xf32>
    %77 = arith.mulf %72, %76 : vector<16x256xf32>
    %cst_23 = arith.constant 0.000000e+00 : f32
    %78 = vector.broadcast %cst_23 : f32 to vector<16x256xf32>
    %79 = arith.cmpf oge, %57, %78 : vector<16x256xf32>
    %cst_24 = arith.constant 0.00999999977 : f32
    %80 = vector.broadcast %cst_24 : f32 to vector<16x256xf32>
    %81 = arith.mulf %80, %57 : vector<16x256xf32>
    %82 = arith.select %79, %57, %81 : vector<16x256xi1>, vector<16x256xf32>
    %cst_25 = arith.constant 0.000000e+00 : f32
    %83 = vector.broadcast %cst_25 : f32 to vector<16x256xf32>
    %84 = arith.cmpf oge, %77, %83 : vector<16x256xf32>
    %cst_26 = arith.constant 0.00999999977 : f32
    %85 = vector.broadcast %cst_26 : f32 to vector<16x256xf32>
    %86 = arith.mulf %85, %77 : vector<16x256xf32>
    %87 = arith.select %84, %77, %86 : vector<16x256xi1>, vector<16x256xf32>
    %c0_27 = arith.constant 0 : index
    %c0_28 = arith.constant 0 : index
    %88 = vector.load %arg2[%c0_27, %c0_28] : memref<2x256xf32, #tpu.memory_space<vmem>>, vector<1x256xf32>
    %89 = vector.broadcast %88 : vector<1x256xf32> to vector<16x256xf32>
    %90 = arith.mulf %82, %89 : vector<16x256xf32>
    %cst_29 = arith.constant dense<0.000000e+00> : vector<16xf32>
    %91 = vector.multi_reduction <add>, %90, %cst_29 [1] : vector<16x256xf32> to vector<16xf32>
    %92 = vector.shape_cast %91 : vector<16xf32> to vector<16x1xf32>
    %c1_30 = arith.constant 1 : index
    %c0_31 = arith.constant 0 : index
    %93 = vector.load %arg2[%c1_30, %c0_31] : memref<2x256xf32, #tpu.memory_space<vmem>>, vector<1x256xf32>
    %94 = vector.broadcast %93 : vector<1x256xf32> to vector<16x256xf32>
    %95 = arith.mulf %87, %94 : vector<16x256xf32>
    %cst_32 = arith.constant dense<0.000000e+00> : vector<16xf32>
    %96 = vector.multi_reduction <add>, %95, %cst_32 [1] : vector<16x256xf32> to vector<16xf32>
    %97 = vector.shape_cast %96 : vector<16xf32> to vector<16x1xf32>
    %98 = arith.addf %92, %97 : vector<16x1xf32>
    %c0_33 = arith.constant 0 : index
    %99 = memref.load %arg6[%c0_33] : memref<1xf32, #tpu.memory_space<smem>>
    %100 = vector.broadcast %99 : f32 to vector<16x1xf32>
    %101 = arith.addf %98, %100 : vector<16x1xf32>
    %c0_34 = arith.constant 0 : index
    %c0_35 = arith.constant 0 : index
    %102 = vector.load %arg3[%c0_34, %c0_35] : memref<2x256xf32, #tpu.memory_space<vmem>>, vector<1x256xf32>
    %103 = vector.broadcast %101 : vector<16x1xf32> to vector<16x256xf32>
    %104 = vector.broadcast %102 : vector<1x256xf32> to vector<16x256xf32>
    %105 = arith.mulf %103, %104 : vector<16x256xf32>
    %c0_36 = arith.constant 0 : index
    %c0_37 = arith.constant 0 : index
    %106 = vector.load %arg4[%c0_36, %c0_37] : memref<2x256xf32, #tpu.memory_space<vmem>>, vector<1x256xf32>
    %107 = vector.broadcast %106 : vector<1x256xf32> to vector<16x256xf32>
    %108 = arith.addf %105, %107 : vector<16x256xf32>
    %c0_38 = arith.constant 0 : index
    %c0_39 = arith.constant 0 : index
    %109 = vector.load %arg7[%c0_38, %c0_39] : memref<16x512xf32, #tpu.memory_space<vmem>>, vector<16x256xf32>
    tpu.vector_store %arg7[%c0_38, %c0_39], %108 {strides = array<i32>} : memref<16x512xf32, #tpu.memory_space<vmem>>, vector<16x256xf32>,
    %c1_40 = arith.constant 1 : index
    %c0_41 = arith.constant 0 : index
    %110 = vector.load %arg3[%c1_40, %c0_41] : memref<2x256xf32, #tpu.memory_space<vmem>>, vector<1x256xf32>
    %111 = vector.broadcast %101 : vector<16x1xf32> to vector<16x256xf32>
    %112 = vector.broadcast %110 : vector<1x256xf32> to vector<16x256xf32>
    %113 = arith.mulf %111, %112 : vector<16x256xf32>
    %c1_42 = arith.constant 1 : index
    %c0_43 = arith.constant 0 : index
    %114 = vector.load %arg4[%c1_42, %c0_43] : memref<2x256xf32, #tpu.memory_space<vmem>>, vector<1x256xf32>
    %115 = vector.broadcast %114 : vector<1x256xf32> to vector<16x256xf32>
    %116 = arith.addf %113, %115 : vector<16x256xf32>
    %c0_44 = arith.constant 0 : index
    %c256 = arith.constant 256 : index
    %117 = vector.load %arg7[%c0_44, %c256] : memref<16x512xf32, #tpu.memory_space<vmem>>, vector<16x256xf32>
    tpu.vector_store %arg7[%c0_44, %c256], %116 {strides = array<i32>} : memref<16x512xf32, #tpu.memory_space<vmem>>, vector<16x256xf32>,
    return
  }
  func.func @transform_0(%arg0: i32) -> (i32, i32, i32) {
    %c0_i32 = arith.constant 0 : i32
    %c0_i32_0 = arith.constant 0 : i32
    %c0_i32_1 = arith.constant 0 : i32
    return %c0_i32, %arg0, %c0_i32_0 : i32, i32, i32
  }
  func.func @transform_1(%arg0: i32) -> (i32, i32) {
    %c0_i32 = arith.constant 0 : i32
    %c0_i32_0 = arith.constant 0 : i32
    %c0_i32_1 = arith.constant 0 : i32
    return %c0_i32, %c0_i32_0 : i32, i32
  }
  func.func @transform_2(%arg0: i32) -> (i32, i32) {
    %c0_i32 = arith.constant 0 : i32
    %c0_i32_0 = arith.constant 0 : i32
    %c0_i32_1 = arith.constant 0 : i32
    return %c0_i32, %c0_i32_0 : i32, i32
  }
  func.func @transform_3(%arg0: i32) -> (i32, i32) {
    %c0_i32 = arith.constant 0 : i32
    %c0_i32_0 = arith.constant 0 : i32
    %c0_i32_1 = arith.constant 0 : i32
    return %c0_i32, %c0_i32_0 : i32, i32
  }
  func.func @transform_4(%arg0: i32) -> i32 {
    %c0_i32 = arith.constant 0 : i32
    %c0_i32_0 = arith.constant 0 : i32
    return %c0_i32 : i32
  }
  func.func @transform_5(%arg0: i32) -> i32 {
    %c0_i32 = arith.constant 0 : i32
    %c0_i32_0 = arith.constant 0 : i32
    return %c0_i32 : i32
  }
  func.func @transform_6(%arg0: i32) -> (i32, i32) {
    %c0_i32 = arith.constant 0 : i32
    %c0_i32_0 = arith.constant 0 : i32
    return %arg0, %c0_i32 : i32, i32
  }
}

</mosaic_0001>

<llo_original>
// kernel: tpu_custom_call.1
$region0: #{tpu_custom_call.1}
  #allocation0 [shape = 'u32[]', space=smem, size = 0x4, offset = 0x4, fixed_abs, tag = 'smem constant byte address 0x4 - core index']
  #allocation1 [shape = 'u32[144,128]{1,0:T(1,128)}', space=vmem, size = 0x12000, scoped, tag = 'internal scratch']
  #allocation2 [shape = 'f32[1]{0:T(128)S(6)}', space=smem, size = 0x200, scoped, tag = 'scoped memory for tpu_custom_call.1']
  %s0 = inlined_call_operand.hbm [shape: f32[4,16,256], index: 0, kind: input, shape index: {}]
  %s1 = inlined_call_operand.hbm [shape: f32[2,256], index: 1, kind: input, shape index: {}]
  %s2 = inlined_call_operand.vmem [shape: f32[2,256], index: 2, kind: input, shape index: {}]
  %s3 = inlined_call_operand.hbm [shape: f32[2,256], index: 3, kind: input, shape index: {}]
  %s4 = inlined_call_operand.vmem [shape: f32[8], index: 4, kind: input, shape index: {}]
  %s5 = inlined_call_operand.<no memory space> [shape: f32[1], index: 5, kind: input, shape index: {}]
  %s6 = inlined_call_operand.hbm [shape: f32[16,512], index: 6, kind: output, shape index: {}]
  %s7 = sld [smem:[#allocation0]]
  $region50: #{tpu_custom_call.1} parent=0
    _
  %s9 = ssub.s32 1, %s7
  %s10 = scalar_select 0, %s9, %s7
  %11 = sst [smem:[#allocation2]] %s5
  $region1: #{tpu_custom_call.1} parent=0
    #allocation3 [shape = 'u8[65536]{0}', space=vmem, size = 0x10000, scoped, tag = 'input window, operand 0, single buffered']
    #allocation4 [shape = 's32[1]{0}', space=sflag, size = 0x4, scoped, tag = 'scoped memory for tpu_custom_call.1']
    #allocation5 [shape = 's32[1]{0}', space=sflag, size = 0x4, scoped, tag = 'scoped memory for tpu_custom_call.1']
    #allocation6 [shape = 's32[1]{0}', space=sflag, size = 0x4, scoped, tag = 'scoped memory for tpu_custom_call.1']
    #allocation7 [shape = 'u8[2048]{0}', space=vmem, size = 0x800, scoped, tag = 'input window, operand 1, single buffered']
    #allocation8 [shape = 's32[1]{0}', space=sflag, size = 0x4, scoped, tag = 'scoped memory for tpu_custom_call.1']
    #allocation9 [shape = 'u8[2048]{0}', space=vmem, size = 0x800, scoped, tag = 'input window, operand 3, single buffered']
    #allocation10 [shape = 'u8[512]{0}', space=smem, size = 0x200, scoped, tag = 'input window, operand 4, single buffered']
    #allocation11 [shape = 'u8[32768]{0}', space=vmem, size = 0x8000, scoped, tag = 'output window, operand 0, single buffered']
    %12 = vsyncpa [#allocation4], 0
    %13 = vsyncpa [#allocation8], 0
    %14 = vsyncpa [#allocation6], 0
    %15 = vsyncpa [#allocation5], 0
    // Predicated region
    $region2: #{tpu_custom_call.1} parent=1 // pred_check
      _
    $region3: #{tpu_custom_call.1} parent=1 // pred_check_branch
      %17 = sbr.rel (0) target = $region5
    $region4: #{tpu_custom_call.1} parent=1 // pred_region
      %s19 = ssub.s32 2048, 2048
      %20 = vsyncadd [#allocation4], %s19
      %s21 = sshll.u32 [#allocation3], 4
      %s22 = int_to_ptr.vmem [resolvable:$true] %s21
      %27 = dma.hbm_to_vmem [thread:$0]  %s0, 2048, %s22, [#allocation4], 256, 256, 16
    $region5: #{tpu_custom_call.1} parent=1 // pred_fallthru
      _
    // Predicated region
    $region6: #{tpu_custom_call.1} parent=1 // pred_check
      _
    $region7: #{tpu_custom_call.1} parent=1 // pred_check_branch
      %29 = sbr.rel (0) target = $region9
    $region8: #{tpu_custom_call.1} parent=1 // pred_region
      %s31 = ssub.s32 64, 64
      %32 = vsyncadd [#allocation8], %s31
      %s34 = sshll.u32 [#allocation7], 4
      %s35 = int_to_ptr.vmem [resolvable:$true] %s34
      %37 = dma.hbm_to_vmem [thread:$0]  %s1, 64, %s35, [#allocation8]
    $region9: #{tpu_custom_call.1} parent=1 // pred_fallthru
      _
    // Predicated region
    $region10: #{tpu_custom_call.1} parent=1 // pred_check
      _
    $region11: #{tpu_custom_call.1} parent=1 // pred_check_branch
      %39 = sbr.rel (0) target = $region13
    $region12: #{tpu_custom_call.1} parent=1 // pred_region
      _
    $region13: #{tpu_custom_call.1} parent=1 // pred_fallthru
      _
    // Predicated region
    $region14: #{tpu_custom_call.1} parent=1 // pred_check
      _
    $region15: #{tpu_custom_call.1} parent=1 // pred_check_branch
      %41 = sbr.rel (0) target = $region17
    $region16: #{tpu_custom_call.1} parent=1 // pred_region
      %s43 = ssub.s32 64, 64
      %44 = vsyncadd [#allocation8], %s43
      %s46 = sshll.u32 [#allocation9], 4
      %s47 = int_to_ptr.vmem [resolvable:$true] %s46
      %49 = dma.hbm_to_vmem [thread:$0]  %s3, 64, %s47, [#allocation8]
    $region17: #{tpu_custom_call.1} parent=1 // pred_fallthru
      _
    // Predicated region
    $region18: #{tpu_custom_call.1} parent=1 // pred_check
      _
    $region19: #{tpu_custom_call.1} parent=1 // pred_check_branch
      %51 = sbr.rel (0) target = $region21
    $region20: #{tpu_custom_call.1} parent=1 // pred_region
      %s53 = ssub.s32 16, 16
      %54 = vsyncadd [#allocation6], %s53
      %s56 = sshll.u32 %s4, 4
      %s57 = int_to_ptr.vmem [resolvable:$true] %s56
      %59 = dma.vmem_to_smem %s57, 16, [#allocation10], [#allocation6]
    $region21: #{tpu_custom_call.1} parent=1 // pred_fallthru
      _
    // Predicated region
    $region22: #{tpu_custom_call.1} parent=1 // pred_check
      _
    $region23: #{tpu_custom_call.1} parent=1 // pred_check_branch
      %61 = sbr.rel (0) target = $region25
    $region24: #{tpu_custom_call.1} parent=1 // pred_region
      _
    $region25: #{tpu_custom_call.1} parent=1 // pred_fallthru
      _
    // Predicated region
    $region26: #{tpu_custom_call.1} parent=1 // pred_check
      _
    $region27: #{tpu_custom_call.1} parent=1 // pred_check_branch
      %63 = sbr.rel (0) target = $region29
    $region28: #{tpu_custom_call.1} parent=1 // pred_region
      %64 = dma.done [#allocation4], 2048
    $region29: #{tpu_custom_call.1} parent=1 // pred_fallthru
      _
    // Predicated region
    $region30: #{tpu_custom_call.1} parent=1 // pred_check
      _
    $region31: #{tpu_custom_call.1} parent=1 // pred_check_branch
      %66 = sbr.rel (0) target = $region33
    $region32: #{tpu_custom_call.1} parent=1 // pred_region
      %67 = dma.done [#allocation8], 64
    $region33: #{tpu_custom_call.1} parent=1 // pred_fallthru
      _
    // Predicated region
    $region34: #{tpu_custom_call.1} parent=1 // pred_check
      _
    $region35: #{tpu_custom_call.1} parent=1 // pred_check_branch
      %69 = sbr.rel (0) target = $region37
    $region36: #{tpu_custom_call.1} parent=1 // pred_region
      %70 = dma.done [#allocation8], 64
    $region37: #{tpu_custom_call.1} parent=1 // pred_fallthru
      _
    // Predicated region
    $region38: #{tpu_custom_call.1} parent=1 // pred_check
      _
    $region39: #{tpu_custom_call.1} parent=1 // pred_check_branch
      %72 = sbr.rel (0) target = $region41
    $region40: #{tpu_custom_call.1} parent=1 // pred_region
      %73 = dma.done [#allocation6], 16
    $region41: #{tpu_custom_call.1} parent=1 // pred_fallthru
      _
    %74 = sfence
    %v75 = vld [vmem:[#allocation3] sm:$0xff]
    %v76 = vld [vmem:[#allocation3 + $0x8] sm:$0xff]
    %v77 = vld [vmem:[#allocation3 + $0x10] sm:$0xff]
    %v78 = vld [vmem:[#allocation3 + $0x18] sm:$0xff]
    %s79 = sld [smem:[#allocation10]]
    %v80 = vstv %s79
    %v81 = vmul.f32 %v80, %v75
    %v82 = vmul.f32 %v80, %v76
    %v83 = vmul.f32 %v80, %v77
    %v84 = vmul.f32 %v80, %v78
    %s85 = sld [smem:[#allocation10 + $0x4]]
    %v86 = vstv %s85
    %v87 = vmul.f32 %v86, %v75
    %v88 = vmul.f32 %v86, %v76
    %v89 = vmul.f32 %v86, %v77
    %v90 = vmul.f32 %v86, %v78
    %s91 = scalar_lea.vmem [#allocation3], 32
    %v92 = vld [vmem:[%s91] sm:$0xff]
    %v93 = vld [vmem:[%s91 + $0x8] sm:$0xff]
    %v94 = vld [vmem:[%s91 + $0x10] sm:$0xff]
    %v95 = vld [vmem:[%s91 + $0x18] sm:$0xff]
    %s96 = sld [smem:[#allocation10 + $0x1]]
    %v97 = vstv %s96
    %v98 = vmul.f32 %v97, %v92
    %v99 = vmul.f32 %v97, %v93
    %v100 = vmul.f32 %v97, %v94
    %v101 = vmul.f32 %v97, %v95
    %v102 = vadd.f32 %v81, %v98
    %v103 = vadd.f32 %v82, %v99
    %v104 = vadd.f32 %v83, %v100
    %v105 = vadd.f32 %v84, %v101
    %s106 = sld [smem:[#allocation10 + $0x5]]
    %v107 = vstv %s106
    %v108 = vmul.f32 %v107, %v92
    %v109 = vmul.f32 %v107, %v93
    %v110 = vmul.f32 %v107, %v94
    %v111 = vmul.f32 %v107, %v95
    %v112 = vadd.f32 %v87, %v108
    %v113 = vadd.f32 %v88, %v109
    %v114 = vadd.f32 %v89, %v110
    %v115 = vadd.f32 %v90, %v111
    %s116 = scalar_lea.vmem [#allocation3], 64
    %v117 = vld [vmem:[%s116] sm:$0xff]
    %v118 = vld [vmem:[%s116 + $0x8] sm:$0xff]
    %v119 = vld [vmem:[%s116 + $0x10] sm:$0xff]
    %v120 = vld [vmem:[%s116 + $0x18] sm:$0xff]
    %s121 = sld [smem:[#allocation10 + $0x2]]
    %v122 = vstv %s121
    %v123 = vmul.f32 %v122, %v117
    %v124 = vmul.f32 %v122, %v118
    %v125 = vmul.f32 %v122, %v119
    %v126 = vmul.f32 %v122, %v120
    %v127 = vadd.f32 %v102, %v123
    %v128 = vadd.f32 %v103, %v124
    %v129 = vadd.f32 %v104, %v125
    %v130 = vadd.f32 %v105, %v126
    %s131 = sld [smem:[#allocation10 + $0x6]]
    %v132 = vstv %s131
    %v133 = vmul.f32 %v132, %v117
    %v134 = vmul.f32 %v132, %v118
    %v135 = vmul.f32 %v132, %v119
    %v136 = vmul.f32 %v132, %v120
    %v137 = vadd.f32 %v112, %v133
    %v138 = vadd.f32 %v113, %v134
    %v139 = vadd.f32 %v114, %v135
    %v140 = vadd.f32 %v115, %v136
    %s141 = scalar_lea.vmem [#allocation3], 96
    %v142 = vld [vmem:[%s141] sm:$0xff]
    %v143 = vld [vmem:[%s141 + $0x8] sm:$0xff]
    %v144 = vld [vmem:[%s141 + $0x10] sm:$0xff]
    %v145 = vld [vmem:[%s141 + $0x18] sm:$0xff]
    %s146 = sld [smem:[#allocation10 + $0x3]]
    %v147 = vstv %s146
    %v148 = vmul.f32 %v147, %v142
    %v149 = vmul.f32 %v147, %v143
    %v150 = vmul.f32 %v147, %v144
    %v151 = vmul.f32 %v147, %v145
    %v152 = vadd.f32 %v127, %v148
    %v153 = vadd.f32 %v128, %v149
    %v154 = vadd.f32 %v129, %v150
    %v155 = vadd.f32 %v130, %v151
    %s156 = sld [smem:[#allocation10 + $0x7]]
    %v157 = vstv %s156
    %v158 = vmul.f32 %v157, %v142
    %v159 = vmul.f32 %v157, %v143
    %v160 = vmul.f32 %v157, %v144
    %v161 = vmul.f32 %v157, %v145
    %v162 = vadd.f32 %v137, %v158
    %v163 = vadd.f32 %v138, %v159
    %v164 = vadd.f32 %v139, %v160
    %v165 = vadd.f32 %v140, %v161
    %v166 = vadd.f32 %v152, %v153
    %167 = vadd.xlane.f32.xlu0 %v166
    %v168 = vpop.xlane.xlu0 %167
    %v169 = vadd.f32 %v154, %v155
    %170 = vadd.xlane.f32.xlu0 %v169
    %v171 = vpop.xlane.xlu0 %170
    %v172 = vmul.f32 %v152, %v152
    %v173 = vmul.f32 %v153, %v153
    %v174 = vmul.f32 %v154, %v154
    %v175 = vmul.f32 %v155, %v155
    %v176 = vadd.f32 %v172, %v173
    %177 = vadd.xlane.f32.xlu0 %v176
    %v178 = vpop.xlane.xlu0 %177
    %v179 = vadd.f32 %v174, %v175
    %180 = vadd.xlane.f32.xlu0 %v179
    %v181 = vpop.xlane.xlu0 %180
    %v182 = vmul.f32 %v168, 0.00390625
    %v183 = vmul.f32 %v171, 0.00390625
    %v184 = vmul.f32 %v178, 0.00390625
    %v185 = vmul.f32 %v181, 0.00390625
    %v186 = vmul.f32 %v182, %v182
    %v187 = vmul.f32 %v183, %v183
    %v188 = vsub.f32 %v184, %v186
    %v189 = vsub.f32 %v185, %v187
    %v190 = vmax.f32 %v188, 0.0
    %v191 = vmax.f32 %v189, 0.0
    %v192 = vsub.f32 %v152, %v182
    %v193 = vsub.f32 %v153, %v182
    %v194 = vsub.f32 %v154, %v183
    %v195 = vsub.f32 %v155, %v183
    %v196 = vadd.f32 %v190, 1e-05
    %v197 = vadd.f32 %v191, 1e-05
    %v198 = vrsqrt.pop %v196
    %v199 = vrsqrt.pop %v197
    %v200 = vmul.f32 %v192, %v198
    %v201 = vmul.f32 %v193, %v198
    %v202 = vmul.f32 %v194, %v199
    %v203 = vmul.f32 %v195, %v199
    %v204 = vadd.f32 %v162, %v163
    %205 = vadd.xlane.f32.xlu0 %v204
    %v206 = vpop.xlane.xlu0 %205
    %v207 = vadd.f32 %v164, %v165
    %208 = vadd.xlane.f32.xlu0 %v207
    %v209 = vpop.xlane.xlu0 %208
    %v210 = vmul.f32 %v162, %v162
    %v211 = vmul.f32 %v163, %v163
    %v212 = vmul.f32 %v164, %v164
    %v213 = vmul.f32 %v165, %v165
    %v214 = vadd.f32 %v210, %v211
    %215 = vadd.xlane.f32.xlu0 %v214
    %v216 = vpop.xlane.xlu0 %215
    %v217 = vadd.f32 %v212, %v213
    %218 = vadd.xlane.f32.xlu0 %v217
    %v219 = vpop.xlane.xlu0 %218
    %v220 = vmul.f32 %v206, 0.00390625
    %v221 = vmul.f32 %v209, 0.00390625
    %v222 = vmul.f32 %v216, 0.00390625
    %v223 = vmul.f32 %v219, 0.00390625
    %v224 = vmul.f32 %v220, %v220
    %v225 = vmul.f32 %v221, %v221
    %v226 = vsub.f32 %v222, %v224
    %v227 = vsub.f32 %v223, %v225
    %v228 = vmax.f32 %v226, 0.0
    %v229 = vmax.f32 %v227, 0.0
    %v230 = vsub.f32 %v162, %v220
    %v231 = vsub.f32 %v163, %v220
    %v232 = vsub.f32 %v164, %v221
    %v233 = vsub.f32 %v165, %v221
    %v234 = vadd.f32 %v228, 1e-05
    %v235 = vadd.f32 %v229, 1e-05
    %v236 = vrsqrt.pop %v234
    %v237 = vrsqrt.pop %v235
    %v238 = vmul.f32 %v230, %v236
    %v239 = vmul.f32 %v231, %v236
    %v240 = vmul.f32 %v232, %v237
    %v241 = vmul.f32 %v233, %v237
    %vm242 = vcmp.ge.f32.partialorder %v200, 0.0
    %vm243 = vcmp.ge.f32.partialorder %v201, 0.0
    %vm244 = vcmp.ge.f32.partialorder %v202, 0.0
    %vm245 = vcmp.ge.f32.partialorder %v203, 0.0
    %v246 = vmul.f32 %v200, 0.01
    %v247 = vmul.f32 %v201, 0.01
    %v248 = vmul.f32 %v202, 0.01
    %v249 = vmul.f32 %v203, 0.01
    %v250 = vsel %vm242, %v200, %v246
    %v251 = vsel %vm243, %v201, %v247
    %v252 = vsel %vm244, %v202, %v248
    %v253 = vsel %vm245, %v203, %v249
    %vm254 = vcmp.ge.f32.partialorder %v238, 0.0
    %vm255 = vcmp.ge.f32.partialorder %v239, 0.0
    %vm256 = vcmp.ge.f32.partialorder %v240, 0.0
    %vm257 = vcmp.ge.f32.partialorder %v241, 0.0
    %v258 = vmul.f32 %v238, 0.01
    %v259 = vmul.f32 %v239, 0.01
    %v260 = vmul.f32 %v240, 0.01
    %v261 = vmul.f32 %v241, 0.01
    %v262 = vsel %vm254, %v238, %v258
    %v263 = vsel %vm255, %v239, %v259
    %v264 = vsel %vm256, %v240, %v260
    %v265 = vsel %vm257, %v241, %v261
    %v266 = vld [vmem:[#allocation7] ss:$2 sm:$0x3]
    %v268 = vlaneseq
    %v269 = vshrl.u32 %v268, 7
    %v270 = vsub.s32 0, %v269
    %v271 = vrot.slane %v266, %v270
    %v272 = vlaneseq
    %v273 = vshrl.u32 %v272, 7
    %v274 = vsub.s32 1, %v273
    %v275 = vrot.slane %v266, %v274
    %v278 = vmul.f32 %v250, %v271
    %v279 = vmul.f32 %v251, %v275
    %v280 = vmul.f32 %v252, %v271
    %v281 = vmul.f32 %v253, %v275
    %v282 = vadd.f32 %v278, %v279
    %283 = vadd.xlane.f32.xlu0 %v282
    %v284 = vpop.xlane.xlu0 %283
    %v285 = vadd.f32 %v280, %v281
    %286 = vadd.xlane.f32.xlu0 %v285
    %v287 = vpop.xlane.xlu0 %286
    %s288 = scalar_lea.vmem [#allocation7], 1
    %v289 = vld [vmem:[%s288] ss:$2 sm:$0x3]
    %v291 = vlaneseq
    %v292 = vshrl.u32 %v291, 7
    %v293 = vsub.s32 0, %v292
    %v294 = vrot.slane %v289, %v293
    %v295 = vlaneseq
    %v296 = vshrl.u32 %v295, 7
    %v297 = vsub.s32 1, %v296
    %v298 = vrot.slane %v289, %v297
    %v301 = vmul.f32 %v262, %v294
    %v302 = vmul.f32 %v263, %v298
    %v303 = vmul.f32 %v264, %v294
    %v304 = vmul.f32 %v265, %v298
    %v305 = vadd.f32 %v301, %v302
    %306 = vadd.xlane.f32.xlu0 %v305
    %v307 = vpop.xlane.xlu0 %306
    %v308 = vadd.f32 %v303, %v304
    %309 = vadd.xlane.f32.xlu0 %v308
    %v310 = vpop.xlane.xlu0 %309
    %v311 = vadd.f32 %v284, %v307
    %v312 = vadd.f32 %v287, %v310
    %s313 = sld [smem:[#allocation2]]
    %v314 = vstv %s313
    %v315 = vadd.f32 %v311, %v314
    %v316 = vadd.f32 %v312, %v314
    %v317 = vld [vmem:[%s2] ss:$2 sm:$0x3]
    %v319 = vlaneseq
    %v320 = vshrl.u32 %v319, 7
    %v321 = vsub.s32 0, %v320
    %v322 = vrot.slane %v317, %v321
    %v323 = vlaneseq
    %v324 = vshrl.u32 %v323, 7
    %v325 = vsub.s32 1, %v324
    %v326 = vrot.slane %v317, %v325
    %v329 = vmul.f32 %v315, %v322
    %v330 = vmul.f32 %v315, %v326
    %v331 = vmul.f32 %v316, %v322
    %v332 = vmul.f32 %v316, %v326
    %v333 = vld [vmem:[#allocation9] ss:$2 sm:$0x3]
    %v335 = vlaneseq
    %v336 = vshrl.u32 %v335, 7
    %v337 = vsub.s32 0, %v336
    %v338 = vrot.slane %v333, %v337
    %v339 = vlaneseq
    %v340 = vshrl.u32 %v339, 7
    %v341 = vsub.s32 1, %v340
    %v342 = vrot.slane %v333, %v341
    %v345 = vadd.f32 %v329, %v338
    %v346 = vadd.f32 %v330, %v342
    %v347 = vadd.f32 %v331, %v338
    %v348 = vadd.f32 %v332, %v342
    %349 = vst [vmem:[#allocation11] sm:$0xff] %v345
    %350 = vst [vmem:[#allocation11 + $0x8] sm:$0xff] %v346
    %351 = vst [vmem:[#allocation11 + $0x20] sm:$0xff] %v347
    %352 = vst [vmem:[#allocation11 + $0x28] sm:$0xff] %v348
    %s353 = scalar_lea.vmem %s2, 1
    %v354 = vld [vmem:[%s353] ss:$2 sm:$0x3]
    %v356 = vlaneseq
    %v357 = vshrl.u32 %v356, 7
    %v358 = vsub.s32 0, %v357
    %v359 = vrot.slane %v354, %v358
    %v360 = vlaneseq
    %v361 = vshrl.u32 %v360, 7
    %v362 = vsub.s32 1, %v361
    %v363 = vrot.slane %v354, %v362
    %v366 = vmul.f32 %v315, %v359
    %v367 = vmul.f32 %v315, %v363
    %v368 = vmul.f32 %v316, %v359
    %v369 = vmul.f32 %v316, %v363
    %s370 = scalar_lea.vmem [#allocation9], 1
    %v371 = vld [vmem:[%s370] ss:$2 sm:$0x3]
    %v373 = vlaneseq
    %v374 = vshrl.u32 %v373, 7
    %v375 = vsub.s32 0, %v374
    %v376 = vrot.slane %v371, %v375
    %v377 = vlaneseq
    %v378 = vshrl.u32 %v377, 7
    %v379 = vsub.s32 1, %v378
    %v380 = vrot.slane %v371, %v379
    %v383 = vadd.f32 %v366, %v376
    %v384 = vadd.f32 %v367, %v380
    %v385 = vadd.f32 %v368, %v376
    %v386 = vadd.f32 %v369, %v380
    %387 = vst [vmem:[#allocation11 + $0x10] sm:$0xff] %v383
    %388 = vst [vmem:[#allocation11 + $0x18] sm:$0xff] %v384
    %389 = vst [vmem:[#allocation11 + $0x30] sm:$0xff] %v385
    %390 = vst [vmem:[#allocation11 + $0x38] sm:$0xff] %v386
    // Predicated region
    $region42: #{tpu_custom_call.1} parent=1 // pred_check
      _
    $region43: #{tpu_custom_call.1} parent=1 // pred_check_branch
      %392 = sbr.rel (0) target = $region45
    $region44: #{tpu_custom_call.1} parent=1 // pred_region
      %s394 = ssub.s32 1024, 1024
      %395 = vsyncadd [#allocation5], %s394
      %s396 = sshll.u32 [#allocation11], 4
      %s397 = int_to_ptr.vmem [resolvable:$true] %s396
      %402 = dma.vmem_to_hbm [thread:$0]  %s397, 1024, %s6, [#allocation5], 512, 512, 32
    $region45: #{tpu_custom_call.1} parent=1 // pred_fallthru
      _
    // Predicated region
    $region46: #{tpu_custom_call.1} parent=1 // pred_check
      _
    $region47: #{tpu_custom_call.1} parent=1 // pred_check_branch
      %404 = sbr.rel (0) target = $region49
    $region48: #{tpu_custom_call.1} parent=1 // pred_region
      %405 = dma.done [#allocation5], 1024
    $region49: #{tpu_custom_call.1} parent=1 // pred_fallthru
      _
    %406 = vsyncpa [#allocation4], 1
    %407 = vsyncpa [#allocation8], 1
    %408 = vsyncpa [#allocation5], 1
    %409 = vsyncpa [#allocation6], 1

</llo_original>
